<compile_context>
chip_gen: v7x
topology: tpu7x:2x2x1
jax: 0.10.0
libtpu: 0.0.40
codegen_flags: <defaults>
</compile_context>

<pallas_src>
import functools

import jax
import jax.numpy as jnp
from jax.experimental import pallas as pl
from jax.experimental.pallas import tpu as pltpu

LANE = 128  # TPU lane width; feature dims are zero-padded to a multiple of this.


def _round_up(n: int, m: int) -> int:
    return ((n + m - 1) // m) * m


# ---------------------------------------------------------------------------
# Kernel: two MXU matmuls per batch tile.
#   h   = relu(x @ W12 + b12)      with W12 = W1 @ W2, b12 = b1 @ W2 + b2
#   out = h @ W3 + b3
# x arrives f32 and is cast to bf16 on the VPU; weights are bf16; all
# accumulation and bias adds are f32; the store is lane-dense f32 (no vst.msk).
# ---------------------------------------------------------------------------
def mlp_kernel(x_ref, w12_ref, b12_ref, w3_ref, b3_ref, o_ref):
    x = x_ref[...].astype(jnp.bfloat16)
    h = jnp.dot(x, w12_ref[...], preferred_element_type=jnp.float32) + b12_ref[...]
    h = jnp.maximum(h, 0.0)
    o_ref[...] = (
        jnp.dot(h.astype(jnp.bfloat16), w3_ref[...],
                preferred_element_type=jnp.float32)
        + b3_ref[...]
    )


def prepare_params(w1, b1, w2, b2, w3, b3, feature_align: int = LANE):
    """One-time parameter prep (run at init, NOT per forward call).

    * Fuses input_layer and hidden_layer (forward() has no activation between
      them): W12 = W1 @ W2, b12 = b1 @ W2 + b2, computed in f32.
    * Zero-pads feature dims to multiples of `feature_align` (128; 256 better
      fills the 256-wide MXU on v6e/v7x for large models).
    * Casts weights to bf16 (MXU operands); biases stay f32 (f32 epilogue).

    Weight layout is (in_features, out_features), i.e. transposed vs. PyTorch
    nn.Linear storage, so the kernel computes plain x @ W + b.
    """
    in_f, hid = w1.shape
    out_f = w3.shape[1]
    hi = jax.lax.Precision.HIGHEST

    w12 = jnp.dot(w1, w2, precision=hi)          # (in_f, hid) f32
    b12 = jnp.dot(b1, w2, precision=hi) + b2     # (1, hid)   f32

    in_p = _round_up(in_f, LANE)
    hid_p = _round_up(hid, feature_align)
    out_p = _round_up(out_f, feature_align)

    w12p = jnp.zeros((in_p, hid_p), jnp.bfloat16).at[:in_f, :hid].set(
        w12.astype(jnp.bfloat16))
    b12p = jnp.zeros((1, hid_p), jnp.float32).at[:, :hid].set(b12)
    w3p = jnp.zeros((hid_p, out_p), jnp.bfloat16).at[:hid, :out_f].set(
        w3.astype(jnp.bfloat16))
    b3p = jnp.zeros((1, out_p), jnp.float32).at[:, :out_f].set(b3)
    return w12p, b12p, w3p, b3p


@functools.partial(jax.jit, static_argnames=("out_features", "tile_b"))
def mlp_forward(x, w12p, b12p, w3p, b3p, *, out_features: int, tile_b: int = 256):
    """x: (B, in_features) f32; fused/padded params from prepare_params()."""
    B, in_f = x.shape
    in_p, hid_p = w12p.shape
    out_p = w3p.shape[1]

    # Batch tile: multiple of 16 (bf16 sublane pack); don't over-pad tiny batches.
    tb = _round_up(max(16, min(tile_b, _round_up(B, 16))), 16)
    b_p = _round_up(B, tb)

    # Pad only the ragged edges of x (kept f32; bf16 cast happens in-kernel).
    if b_p != B or in_p != in_f:
        x = jnp.pad(x, ((0, b_p - B), (0, in_p - in_f)))

    grid = (b_p // tb,)
    # Megacore-shard the batch axis only when there is enough work per core;
    # tiny grids on v7x would otherwise duplicate the weight DMAs per core.
    semantics = ("parallel",) if grid[0] >= 4 else ("arbitrary",)

    # Resident weights + (double-buffered) activation tiles, with headroom.
    weight_bytes = (w12p.size + w3p.size) * 2 + (b12p.size + b3p.size) * 4
    act_bytes = tb * in_p * 4 + tb * out_p * 4
    vmem_needed = 2 * (weight_bytes + act_bytes) + (2 << 20)
    vmem_limit = int(min(64 << 20, max(32 << 20, vmem_needed)))

    flops = 2 * b_p * (in_p * hid_p + hid_p * out_p)
    bytes_accessed = b_p * in_p * 4 + weight_bytes + b_p * out_p * 4

    out = pl.pallas_call(
        mlp_kernel,
        out_shape=jax.ShapeDtypeStruct((b_p, out_p), jnp.float32),
        grid_spec=pltpu.PrefetchScalarGridSpec(
            num_scalar_prefetch=0,
            grid=grid,
            in_specs=[
                # activations: tiled over batch
                pl.BlockSpec((tb, in_p), lambda i: (i, 0)),
                # fused weights / biases: VMEM-resident across all batch tiles
                pl.BlockSpec((in_p, hid_p), lambda i: (0, 0)),
                pl.BlockSpec((1, hid_p), lambda i: (0, 0)),
                pl.BlockSpec((hid_p, out_p), lambda i: (0, 0)),
                pl.BlockSpec((1, out_p), lambda i: (0, 0)),
            ],
            out_specs=pl.BlockSpec((tb, out_p), lambda i: (i, 0)),
        ),
        compiler_params=pltpu.CompilerParams(
            dimension_semantics=semantics,
            vmem_limit_bytes=vmem_limit,
        ),
        cost_estimate=pl.CostEstimate(
            flops=flops, transcendentals=0, bytes_accessed=bytes_accessed),
    )(x, w12p, b12p, w3p, b3p)

    # Slice only when padding was actually added.
    if b_p != B or out_p != out_features:
        out = out[:B, :out_features]
    return out


def init_params(key, in_features, hidden_dim, out_features):
    """Deterministic init mimicking nn.Linear's uniform(-1/sqrt(fan_in), 1/sqrt(fan_in))."""
    ks = jax.random.split(key, 6)

    def linear(kw, kb, fan_in, fan_out):
        bound = 1.0 / jnp.sqrt(fan_in)
        # stored as (fan_in, fan_out) so the kernel computes x @ W
        w = jax.random.uniform(kw, (fan_in, fan_out), jnp.float32, -bound, bound)
        b = jax.random.uniform(kb, (1, fan_out), jnp.float32, -bound, bound)
        return w, b

    w1, b1 = linear(ks[0], ks[1], in_features, hidden_dim)
    w2, b2 = linear(ks[2], ks[3], hidden_dim, hidden_dim)
    w3, b3 = linear(ks[4], ks[5], hidden_dim, out_features)
    return w1, b1, w2, b2, w3, b3


def ref_forward_f32(x, w1, b1, w2, b2, w3, b3):
    """Exact f32 math of the original module's forward()."""
    h = (x @ w1 + b1) @ w2 + b2
    return jnp.maximum(h, 0.0) @ w3 + b3


def ref_forward_bf16(x, w1, b1, w2, b2, w3, b3):
    """Kernel-faithful reference: fused layers 1-2, bf16 MXU operands, f32 accumulate."""
    f32, hi = jnp.float32, jax.lax.Precision.HIGHEST
    bf = lambda a: a.astype(jnp.bfloat16).astype(f32)
    w12 = jnp.dot(w1, w2, precision=hi)
    b12 = jnp.dot(b1, w2, precision=hi) + b2
    h = jnp.dot(bf(x), bf(w12), precision=hi) + b12
    h = jnp.maximum(h, 0.0)
    return jnp.dot(bf(h), bf(w3), precision=hi) + b3


if __name__ == "__main__":
    in_features, hidden_dim, out_features = 32, 64, 16
    batch = 8

    key = jax.random.PRNGKey(0)
    kx, kp = jax.random.split(key)

    x = jax.random.normal(kx, (batch, in_features), jnp.float32)
    raw_params = init_params(kp, in_features, hidden_dim, out_features)

    # One-time parameter prep (fusion + padding + bf16 cast) — hoisted out of the
    # per-call path as per the performance review.
    prepared = jax.block_until_ready(prepare_params(*raw_params))

    out = mlp_forward(x, *prepared, out_features=out_features)
    out = jax.block_until_ready(out)
    assert out.shape == (batch, out_features)

    # Correctness: tight vs. bf16-faithful fused reference, loose vs. full-f32 math.
    ref_bf = ref_forward_bf16(x, *raw_params)
    ref_f32 = ref_forward_f32(x, *raw_params)
    err_bf = jnp.max(jnp.abs(out - ref_bf))
    err_f32 = jnp.max(jnp.abs(out - ref_f32))
    assert jnp.allclose(out, ref_bf, atol=2e-3, rtol=2e-3), \
        f"max err vs bf16-faithful ref: {err_bf}"
    assert jnp.allclose(out, ref_f32, atol=5e-2, rtol=5e-2), \
        f"max err vs f32 ref: {err_f32}"

    print("KERNEL_OK")
</pallas_src>

<mosaic_0001>
module attributes {stable_mosaic.version = 11 : i64} {
  func.func @mlp_kernel(%arg0: i32, %arg1: memref<16x128xf32, #tpu.memory_space<vmem>>, %arg2: memref<128x128xbf16, #tpu.memory_space<vmem>>, %arg3: memref<1x128xf32, #tpu.memory_space<vmem>>, %arg4: memref<128x128xbf16, #tpu.memory_space<vmem>>, %arg5: memref<1x128xf32, #tpu.memory_space<vmem>>, %arg6: memref<16x128xf32, #tpu.memory_space<vmem>>) attributes {dimension_semantics = [#tpu.dimension_semantics<arbitrary>], iteration_bounds = array<i64: 1>, scalar_prefetch = 0 : i64, scratch_operands = 0 : i64, tpu.core_type = #tpu.core_type<tc>, window_params = [{transform_indices = @transform_0, window_bounds = array<i64: 16, 128>}, {pipeline_mode = #tpu.pipeline_mode<synchronous>, transform_indices = @transform_1, window_bounds = array<i64: 128, 128>}, {pipeline_mode = #tpu.pipeline_mode<synchronous>, transform_indices = @transform_2, window_bounds = array<i64: 1, 128>}, {pipeline_mode = #tpu.pipeline_mode<synchronous>, transform_indices = @transform_3, window_bounds = array<i64: 128, 128>}, {pipeline_mode = #tpu.pipeline_mode<synchronous>, transform_indices = @transform_4, window_bounds = array<i64: 1, 128>}, {transform_indices = @transform_5, window_bounds = array<i64: 16, 128>}]} {
    %c0 = arith.constant 0 : index
    %c0_0 = arith.constant 0 : index
    %0 = vector.load %arg1[%c0, %c0_0] : memref<16x128xf32, #tpu.memory_space<vmem>>, vector<16x128xf32>
    %1 = arith.truncf %0 : vector<16x128xf32> to vector<16x128xbf16>
    %c0_1 = arith.constant 0 : index
    %c0_2 = arith.constant 0 : index
    %2 = vector.load %arg2[%c0_1, %c0_2] : memref<128x128xbf16, #tpu.memory_space<vmem>>, vector<128x128xbf16>
    %cst = arith.constant dense<0.000000e+00> : vector<16x128xf32>
    %3 = tpu.matmul %1, %2, %cst {dimension_numbers = #tpu.dot_dimension_numbers<[1], [0], [0], [1], [0, 0, 1, 1], [], []>} : vector<16x128xbf16>, vector<128x128xbf16>, vector<16x128xf32> -> vector<16x128xf32>
    %c0_3 = arith.constant 0 : index
    %c0_4 = arith.constant 0 : index
    %4 = vector.load %arg3[%c0_3, %c0_4] : memref<1x128xf32, #tpu.memory_space<vmem>>, vector<1x128xf32>
    %5 = vector.broadcast %4 : vector<1x128xf32> to vector<16x128xf32>
    %6 = arith.addf %3, %5 : vector<16x128xf32>
    %cst_5 = arith.constant 0.000000e+00 : f32
    %7 = vector.broadcast %cst_5 : f32 to vector<16x128xf32>
    %8 = arith.maximumf %6, %7 : vector<16x128xf32>
    %9 = arith.truncf %8 : vector<16x128xf32> to vector<16x128xbf16>
    %c0_6 = arith.constant 0 : index
    %c0_7 = arith.constant 0 : index
    %10 = vector.load %arg4[%c0_6, %c0_7] : memref<128x128xbf16, #tpu.memory_space<vmem>>, vector<128x128xbf16>
    %cst_8 = arith.constant dense<0.000000e+00> : vector<16x128xf32>
    %11 = tpu.matmul %9, %10, %cst_8 {dimension_numbers = #tpu.dot_dimension_numbers<[1], [0], [0], [1], [0, 0, 1, 1], [], []>} : vector<16x128xbf16>, vector<128x128xbf16>, vector<16x128xf32> -> vector<16x128xf32>
    %c0_9 = arith.constant 0 : index
    %c0_10 = arith.constant 0 : index
    %12 = vector.load %arg5[%c0_9, %c0_10] : memref<1x128xf32, #tpu.memory_space<vmem>>, vector<1x128xf32>
    %13 = vector.broadcast %12 : vector<1x128xf32> to vector<16x128xf32>
    %14 = arith.addf %11, %13 : vector<16x128xf32>
    %c0_11 = arith.constant 0 : index
    %c0_12 = arith.constant 0 : index
    %15 = vector.load %arg6[%c0_11, %c0_12] : memref<16x128xf32, #tpu.memory_space<vmem>>, vector<16x128xf32>
    tpu.vector_store %arg6[%c0_11, %c0_12], %14 {strides = array<i32>} : memref<16x128xf32, #tpu.memory_space<vmem>>, vector<16x128xf32>,
    return
  }
  func.func @transform_0(%arg0: i32) -> (i32, i32) {
    %c0_i32 = arith.constant 0 : i32
    %c0_i32_0 = arith.constant 0 : i32
    return %arg0, %c0_i32 : i32, i32
  }
  func.func @transform_1(%arg0: i32) -> (i32, i32) {
    %c0_i32 = arith.constant 0 : i32
    %c0_i32_0 = arith.constant 0 : i32
    %c0_i32_1 = arith.constant 0 : i32
    return %c0_i32, %c0_i32_0 : i32, i32
  }
  func.func @transform_2(%arg0: i32) -> (i32, i32) {
    %c0_i32 = arith.constant 0 : i32
    %c0_i32_0 = arith.constant 0 : i32
    %c0_i32_1 = arith.constant 0 : i32
    return %c0_i32, %c0_i32_0 : i32, i32
  }
  func.func @transform_3(%arg0: i32) -> (i32, i32) {
    %c0_i32 = arith.constant 0 : i32
    %c0_i32_0 = arith.constant 0 : i32
    %c0_i32_1 = arith.constant 0 : i32
    return %c0_i32, %c0_i32_0 : i32, i32
  }
  func.func @transform_4(%arg0: i32) -> (i32, i32) {
    %c0_i32 = arith.constant 0 : i32
    %c0_i32_0 = arith.constant 0 : i32
    %c0_i32_1 = arith.constant 0 : i32
    return %c0_i32, %c0_i32_0 : i32, i32
  }
  func.func @transform_5(%arg0: i32) -> (i32, i32) {
    %c0_i32 = arith.constant 0 : i32
    %c0_i32_0 = arith.constant 0 : i32
    return %arg0, %c0_i32 : i32, i32
  }
}

</mosaic_0001>

<llo_original>
// kernel: mlp_forward.1
$region0: #{mlp_forward.1}
  #allocation0 [shape = 'u32[]', space=smem, size = 0x4, offset = 0x4, fixed_abs, tag = 'smem constant byte address 0x4 - core index']
  #allocation1 [shape = 'u32[144,128]{1,0:T(1,128)}', space=vmem, size = 0x12000, scoped, tag = 'internal scratch']
  %s0 = inlined_call_operand.vmem [shape: f32[16,128], index: 0, kind: input, shape index: {}]
  %s1 = inlined_call_operand.hbm [shape: bf16[128,128], index: 1, kind: input, shape index: {}]
  %s2 = inlined_call_operand.vmem [shape: f32[1,128], index: 2, kind: input, shape index: {}]
  %s3 = inlined_call_operand.hbm [shape: bf16[128,128], index: 3, kind: input, shape index: {}]
  %s4 = inlined_call_operand.vmem [shape: f32[1,128], index: 4, kind: input, shape index: {}]
  %s5 = inlined_call_operand.vmem [shape: f32[16,128], index: 5, kind: output, shape index: {}]
  %s6 = sld [smem:[#allocation0]]
  $region38: #{mlp_forward.1} parent=0
    _
  %s8 = ssub.s32 1, %s6
  %s9 = scalar_select 0, %s8, %s6
  $region1: #{mlp_forward.1} parent=0
    #allocation2 [shape = 'u8[32768]{0}', space=vmem, size = 0x8000, scoped, tag = 'input window, operand 1, single buffered']
    #allocation3 [shape = 's32[1]{0}', space=sflag, size = 0x4, scoped, tag = 'scoped memory for mlp_forward.1']
    #allocation4 [shape = 'u8[32768]{0}', space=vmem, size = 0x8000, scoped, tag = 'input window, operand 3, single buffered']
    #allocation5 [shape = 's32[1]{0}', space=sflag, size = 0x4, scoped, tag = 'scoped memory for mlp_forward.1']
    %10 = vsyncpa [#allocation3], 0
    %11 = vsyncpa [#allocation5], 0
    // Predicated region
    $region2: #{mlp_forward.1} parent=1 // pred_check
      _
    $region3: #{mlp_forward.1} parent=1 // pred_check_branch
      %13 = sbr.rel (0) target = $region5
    $region4: #{mlp_forward.1} parent=1 // pred_region
      _
    $region5: #{mlp_forward.1} parent=1 // pred_fallthru
      _
    // Predicated region
    $region6: #{mlp_forward.1} parent=1 // pred_check
      _
    $region7: #{mlp_forward.1} parent=1 // pred_check_branch
      %15 = sbr.rel (0) target = $region9
    $region8: #{mlp_forward.1} parent=1 // pred_region
      %s17 = ssub.s32 1024, 1024
      %18 = vsyncadd [#allocation3], %s17
      %s19 = sshll.u32 [#allocation2], 4
      %s20 = int_to_ptr.vmem [resolvable:$true] %s19
      %25 = dma.hbm_to_vmem [thread:$0]  %s1, 1024, %s20, [#allocation3], 64, 64, 4
    $region9: #{mlp_forward.1} parent=1 // pred_fallthru
      _
    // Predicated region
    $region10: #{mlp_forward.1} parent=1 // pred_check
      _
    $region11: #{mlp_forward.1} parent=1 // pred_check_branch
      %27 = sbr.rel (0) target = $region13
    $region12: #{mlp_forward.1} parent=1 // pred_region
      _
    $region13: #{mlp_forward.1} parent=1 // pred_fallthru
      _
    // Predicated region
    $region14: #{mlp_forward.1} parent=1 // pred_check
      _
    $region15: #{mlp_forward.1} parent=1 // pred_check_branch
      %29 = sbr.rel (0) target = $region17
    $region16: #{mlp_forward.1} parent=1 // pred_region
      %s31 = ssub.s32 1024, 1024
      %32 = vsyncadd [#allocation5], %s31
      %s33 = sshll.u32 [#allocation4], 4
      %s34 = int_to_ptr.vmem [resolvable:$true] %s33
      %39 = dma.hbm_to_vmem [thread:$0]  %s3, 1024, %s34, [#allocation5], 64, 64, 4
    $region17: #{mlp_forward.1} parent=1 // pred_fallthru
      _
    // Predicated region
    $region18: #{mlp_forward.1} parent=1 // pred_check
      _
    $region19: #{mlp_forward.1} parent=1 // pred_check_branch
      %41 = sbr.rel (0) target = $region21
    $region20: #{mlp_forward.1} parent=1 // pred_region
      _
    $region21: #{mlp_forward.1} parent=1 // pred_fallthru
      _
    // Predicated region
    $region22: #{mlp_forward.1} parent=1 // pred_check
      _
    $region23: #{mlp_forward.1} parent=1 // pred_check_branch
      %43 = sbr.rel (0) target = $region25
    $region24: #{mlp_forward.1} parent=1 // pred_region
      %44 = dma.done [#allocation3], 1024
    $region25: #{mlp_forward.1} parent=1 // pred_fallthru
      _
    // Predicated region
    $region26: #{mlp_forward.1} parent=1 // pred_check
      _
    $region27: #{mlp_forward.1} parent=1 // pred_check_branch
      %46 = sbr.rel (0) target = $region29
    $region28: #{mlp_forward.1} parent=1 // pred_region
      %47 = dma.done [#allocation5], 1024
    $region29: #{mlp_forward.1} parent=1 // pred_fallthru
      _
    %v49 = vld [vmem:[%s0] sm:$0xff]
    %v50 = vld [vmem:[%s0 + $0x8] sm:$0xff]
    %v51 = vpack.c.bf16 %v50, %v49
    %v52 = vld [vmem:[#allocation2] sm:$0xf]
    %v53 = vld [vmem:[#allocation2 + $0x4] sm:$0xf]
    %v54 = vld [vmem:[#allocation2 + $0x8] sm:$0xf]
    %v55 = vld [vmem:[#allocation2 + $0xc] sm:$0xf]
    %v56 = vld [vmem:[#allocation2 + $0x10] sm:$0xf]
    %v57 = vld [vmem:[#allocation2 + $0x14] sm:$0xf]
    %v58 = vld [vmem:[#allocation2 + $0x18] sm:$0xf]
    %v59 = vld [vmem:[#allocation2 + $0x1c] sm:$0xf]
    %v60 = vld [vmem:[#allocation2 + $0x20] sm:$0xf]
    %v61 = vld [vmem:[#allocation2 + $0x24] sm:$0xf]
    %v62 = vld [vmem:[#allocation2 + $0x28] sm:$0xf]
    %v63 = vld [vmem:[#allocation2 + $0x2c] sm:$0xf]
    %v64 = vld [vmem:[#allocation2 + $0x30] sm:$0xf]
    %v65 = vld [vmem:[#allocation2 + $0x34] sm:$0xf]
    %v66 = vld [vmem:[#allocation2 + $0x38] sm:$0xf]
    %v67 = vld [vmem:[#allocation2 + $0x3c] sm:$0xf]
    %v68 = vld [vmem:[%s2] sm:$0x1]
    %v70 = vlaneseq
    %v71 = vshrl.u32 %v70, 7
    %v72 = vsub.s32 0, %v71
    %v73 = vrot.slane %v68, %v72
    %v91 = vunpack.c.l.b16 %v52
    %v92 = vunpack.c.l.b16 %v53
    %v93 = vunpack.c.l.b16 %v54
    %v94 = vunpack.c.l.b16 %v55
    %v95 = vunpack.c.l.b16 %v56
    %v96 = vunpack.c.l.b16 %v57
    %v97 = vunpack.c.l.b16 %v58
    %v98 = vunpack.c.l.b16 %v59
    %v99 = vunpack.c.l.b16 %v60
    %v100 = vunpack.c.l.b16 %v61
    %v101 = vunpack.c.l.b16 %v62
    %v102 = vunpack.c.l.b16 %v63
    %v103 = vunpack.c.l.b16 %v64
    %v104 = vunpack.c.l.b16 %v65
    %v105 = vunpack.c.l.b16 %v66
    %v106 = vunpack.c.l.b16 %v67
    %v107 = vpack.c.b16 %v92, %v91
    %v108 = vpack.c.b16 %v94, %v93
    %v109 = vpack.c.b16 %v96, %v95
    %v110 = vpack.c.b16 %v98, %v97
    %v111 = vpack.c.b16 %v100, %v99
    %v112 = vpack.c.b16 %v102, %v101
    %v113 = vpack.c.b16 %v104, %v103
    %v114 = vpack.c.b16 %v106, %v105
    %123 = vmatprep.subr.bf16.mxu0 0
    %124 = vmatpush1.bf16.msra.mxu0 %v107
    %125 = vmatprep.subr.bf16.mxu0 0
    %126 = vmatpush1.bf16.msra.mxu0 %v108
    %127 = vmatprep.subr.bf16.mxu0 0
    %128 = vmatpush1.bf16.msra.mxu0 %v109
    %129 = vmatprep.subr.bf16.mxu0 0
    %130 = vmatpush1.bf16.msra.mxu0 %v110
    %131 = vmatprep.subr.bf16.mxu0 0
    %132 = vmatpush1.bf16.msra.mxu0 %v111
    %133 = vmatprep.subr.bf16.mxu0 0
    %134 = vmatpush1.bf16.msra.mxu0 %v112
    %135 = vmatprep.subr.bf16.mxu0 0
    %136 = vmatpush1.bf16.msra.mxu0 %v113
    %137 = vmatprep.subr.bf16.mxu0 0
    %138 = vmatpush1.bf16.msra.mxu0 %v114
    %139 = vmatprep.subr.bf16.mxu0 0
    %140 = vmatpush1.bf16.msra.mxu0 0
    %141 = vmatprep.subr.bf16.mxu0 0
    %142 = vmatpush1.bf16.msra.mxu0 0
    %143 = vmatprep.subr.bf16.mxu0 0
    %144 = vmatpush1.bf16.msra.mxu0 0
    %145 = vmatprep.subr.bf16.mxu0 0
    %146 = vmatpush1.bf16.msra.mxu0 0
    %147 = vmatprep.subr.bf16.mxu0 0
    %148 = vmatpush1.bf16.msra.mxu0 0
    %149 = vmatprep.subr.bf16.mxu0 0
    %150 = vmatpush1.bf16.msra.mxu0 0
    %151 = vmatprep.subr.bf16.mxu0 0
    %152 = vmatpush1.bf16.msra.mxu0 0
    %153 = vmatprep.subr.bf16.mxu0 0
    %154 = vmatpush1.bf16.msra.mxu0 0
    %155 = vmatprep.mubr.bf16.mxu0 0
    %156 = vmatmul.mubr.bf16.gmra.mrb[0].mxu0 %v51
    %v157 = vpop.f32.mrb[0].mxu0
    %v158 = vadd.f32 %v73, %v157
    %v159 = vpop.f32.mrb[0].mxu0
    %v160 = vpop.f32.mrb[0].mxu0
    %v161 = vadd.f32 %v73, %v160
    %v162 = vpop.f32.mrb[0].mxu0
    %163 = vdwg.mxu0
    %v164 = vmax.f32 %v158, 0.0
    %v165 = vmax.f32 %v161, 0.0
    %v166 = vpack.c.bf16 %v165, %v164
    %v167 = vld [vmem:[#allocation4] sm:$0xf]
    %v168 = vld [vmem:[#allocation4 + $0x4] sm:$0xf]
    %v169 = vld [vmem:[#allocation4 + $0x8] sm:$0xf]
    %v170 = vld [vmem:[#allocation4 + $0xc] sm:$0xf]
    %v171 = vld [vmem:[#allocation4 + $0x10] sm:$0xf]
    %v172 = vld [vmem:[#allocation4 + $0x14] sm:$0xf]
    %v173 = vld [vmem:[#allocation4 + $0x18] sm:$0xf]
    %v174 = vld [vmem:[#allocation4 + $0x1c] sm:$0xf]
    %v175 = vld [vmem:[#allocation4 + $0x20] sm:$0xf]
    %v176 = vld [vmem:[#allocation4 + $0x24] sm:$0xf]
    %v177 = vld [vmem:[#allocation4 + $0x28] sm:$0xf]
    %v178 = vld [vmem:[#allocation4 + $0x2c] sm:$0xf]
    %v179 = vld [vmem:[#allocation4 + $0x30] sm:$0xf]
    %v180 = vld [vmem:[#allocation4 + $0x34] sm:$0xf]
    %v181 = vld [vmem:[#allocation4 + $0x38] sm:$0xf]
    %v182 = vld [vmem:[#allocation4 + $0x3c] sm:$0xf]
    %v183 = vld [vmem:[%s4] sm:$0x1]
    %v185 = vlaneseq
    %v186 = vshrl.u32 %v185, 7
    %v187 = vsub.s32 0, %v186
    %v188 = vrot.slane %v183, %v187
    %v206 = vunpack.c.l.b16 %v167
    %v207 = vunpack.c.l.b16 %v168
    %v208 = vunpack.c.l.b16 %v169
    %v209 = vunpack.c.l.b16 %v170
    %v210 = vunpack.c.l.b16 %v171
    %v211 = vunpack.c.l.b16 %v172
    %v212 = vunpack.c.l.b16 %v173
    %v213 = vunpack.c.l.b16 %v174
    %v214 = vunpack.c.l.b16 %v175
    %v215 = vunpack.c.l.b16 %v176
    %v216 = vunpack.c.l.b16 %v177
    %v217 = vunpack.c.l.b16 %v178
    %v218 = vunpack.c.l.b16 %v179
    %v219 = vunpack.c.l.b16 %v180
    %v220 = vunpack.c.l.b16 %v181
    %v221 = vunpack.c.l.b16 %v182
    %v222 = vpack.c.b16 %v207, %v206
    %v223 = vpack.c.b16 %v209, %v208
    %v224 = vpack.c.b16 %v211, %v210
    %v225 = vpack.c.b16 %v213, %v212
    %v226 = vpack.c.b16 %v215, %v214
    %v227 = vpack.c.b16 %v217, %v216
    %v228 = vpack.c.b16 %v219, %v218
    %v229 = vpack.c.b16 %v221, %v220
    %238 = vmatprep.subr.bf16.mxu0 0
    %239 = vmatpush1.bf16.msra.mxu0 %v222
    %240 = vmatprep.subr.bf16.mxu0 0
    %241 = vmatpush1.bf16.msra.mxu0 %v223
    %242 = vmatprep.subr.bf16.mxu0 0
    %243 = vmatpush1.bf16.msra.mxu0 %v224
    %244 = vmatprep.subr.bf16.mxu0 0
    %245 = vmatpush1.bf16.msra.mxu0 %v225
    %246 = vmatprep.subr.bf16.mxu0 0
    %247 = vmatpush1.bf16.msra.mxu0 %v226
    %248 = vmatprep.subr.bf16.mxu0 0
    %249 = vmatpush1.bf16.msra.mxu0 %v227
    %250 = vmatprep.subr.bf16.mxu0 0
    %251 = vmatpush1.bf16.msra.mxu0 %v228
    %252 = vmatprep.subr.bf16.mxu0 0
    %253 = vmatpush1.bf16.msra.mxu0 %v229
    %254 = vmatprep.subr.bf16.mxu0 0
    %255 = vmatpush1.bf16.msra.mxu0 0
    %256 = vmatprep.subr.bf16.mxu0 0
    %257 = vmatpush1.bf16.msra.mxu0 0
    %258 = vmatprep.subr.bf16.mxu0 0
    %259 = vmatpush1.bf16.msra.mxu0 0
    %260 = vmatprep.subr.bf16.mxu0 0
    %261 = vmatpush1.bf16.msra.mxu0 0
    %262 = vmatprep.subr.bf16.mxu0 0
    %263 = vmatpush1.bf16.msra.mxu0 0
    %264 = vmatprep.subr.bf16.mxu0 0
    %265 = vmatpush1.bf16.msra.mxu0 0
    %266 = vmatprep.subr.bf16.mxu0 0
    %267 = vmatpush1.bf16.msra.mxu0 0
    %268 = vmatprep.subr.bf16.mxu0 0
    %269 = vmatpush1.bf16.msra.mxu0 0
    %270 = vmatprep.mubr.bf16.mxu0 0
    %271 = vmatmul.mubr.bf16.gmra.mrb[0].mxu0 %v166
    %v272 = vpop.f32.mrb[0].mxu0
    %v273 = vadd.f32 %v188, %v272
    %v274 = vpop.f32.mrb[0].mxu0
    %v275 = vpop.f32.mrb[0].mxu0
    %v276 = vadd.f32 %v188, %v275
    %v277 = vpop.f32.mrb[0].mxu0
    %278 = vdwg.mxu0
    %279 = vst [vmem:[%s5] sm:$0xff] %v273
    %280 = vst [vmem:[%s5 + $0x8] sm:$0xff] %v276
    // Predicated region
    $region30: #{mlp_forward.1} parent=1 // pred_check
      _
    $region31: #{mlp_forward.1} parent=1 // pred_check_branch
      %282 = sbr.rel (0) target = $region33
    $region32: #{mlp_forward.1} parent=1 // pred_region
      _
    $region33: #{mlp_forward.1} parent=1 // pred_fallthru
      _
    // Predicated region
    $region34: #{mlp_forward.1} parent=1 // pred_check
      _
    $region35: #{mlp_forward.1} parent=1 // pred_check_branch
      %284 = sbr.rel (0) target = $region37
    $region36: #{mlp_forward.1} parent=1 // pred_region
      _
    $region37: #{mlp_forward.1} parent=1 // pred_fallthru
      _
    %285 = vsyncpa [#allocation3], 1
    %286 = vsyncpa [#allocation5], 1

</llo_original>
